<compile_context>
chip_gen: v5e
topology: v5e:2x2
jax: 0.10.0
libtpu: 0.0.40
codegen_flags: <defaults>
</compile_context>

<pallas_src>
import dataclasses
import math
import numpy as np

import jax
import jax.numpy as jnp
from jax.experimental import pallas as pl
from jax.experimental.pallas import tpu as pltpu


# --------------------------------------------------------------------------
# Deterministic buffer construction (the module's __init__):
# real spherical harmonics split into alpha part `sha` and beta part `shb`.
# (Constant-factor conventions may differ from e3nn internals, but shapes,
#  dtypes and the forward contraction semantics are identical.)
# --------------------------------------------------------------------------
def _s2_grid(res_beta, res_alpha):
    i = np.arange(res_beta, dtype=np.float64)
    betas = (i + 0.5) / res_beta * math.pi
    i = np.arange(res_alpha, dtype=np.float64)
    alphas = i / res_alpha * 2 * math.pi
    return betas, alphas


def _sh_alpha_part(lmax, alphas):
    # [m = 2*lmax+1, a]; row j corresponds to m = j - lmax
    sha = np.zeros((2 * lmax + 1, alphas.shape[0]), dtype=np.float64)
    sha[lmax] = 1.0
    for m in range(1, lmax + 1):
        sha[lmax + m] = math.sqrt(2.0) * np.cos(m * alphas)
        sha[lmax - m] = math.sqrt(2.0) * np.sin(m * alphas)
    return sha


def _legendre_normalized(lmax, x):
    # Orthonormalized associated Legendre P̄_{l,m}(x), shape [lmax+1, lmax+1, B]
    B = x.shape[0]
    P = np.zeros((lmax + 1, lmax + 1, B), dtype=np.float64)
    P[0, 0] = math.sqrt(1.0 / (4.0 * math.pi))
    s = np.sqrt(np.clip(1.0 - x * x, 0.0, None))
    for m in range(1, lmax + 1):
        P[m, m] = -math.sqrt((2 * m + 1) / (2.0 * m)) * s * P[m - 1, m - 1]
    for m in range(0, lmax):
        P[m + 1, m] = math.sqrt(2 * m + 3) * x * P[m, m]
    for m in range(0, lmax + 1):
        for l in range(m + 2, lmax + 1):
            a = math.sqrt((4 * l * l - 1) / (l * l - m * m))
            b = math.sqrt(((l - 1) ** 2 - m * m) / (4 * (l - 1) ** 2 - 1))
            P[l, m] = a * (x * P[l - 1, m] - b * P[l - 2, m])
    return P


def _sh_beta_part(lmax, cosbeta):
    # [l, m = 2*lmax+1, b]
    P = _legendre_normalized(lmax, cosbeta)
    shb = np.zeros((lmax + 1, 2 * lmax + 1, cosbeta.shape[0]), dtype=np.float64)
    for l in range(lmax + 1):
        for m in range(-l, l + 1):
            shb[l, lmax + m] = P[l, abs(m)]
    return shb


def _expand_matrix(lmax):
    # [l, m, i] with i = l^2 + l + m
    M = np.zeros((lmax + 1, 2 * lmax + 1, (lmax + 1) ** 2), dtype=np.float64)
    for l in range(lmax + 1):
        for m in range(-l, l + 1):
            M[l, lmax + m, l * l + l + m] = 1.0
    return M


def make_to_s2grid_buffers(lmax, res=None, normalization="component"):
    assert normalization in ("norm", "component")
    if isinstance(res, int):
        res_beta, res_alpha = res, res
    elif res is None:
        res_beta = 2 * (lmax + 1)
        res_alpha = 2 * res_beta
    else:
        res_beta, res_alpha = res
    assert res_beta % 2 == 0
    assert res_beta >= 2 * (lmax + 1)

    betas, alphas = _s2_grid(res_beta, res_alpha)
    sha = _sh_alpha_part(lmax, alphas)                      # [m, a]
    shb = _sh_beta_part(lmax, np.cos(betas))                # [l, m, b]

    if normalization == "component":
        n = (math.sqrt(4 * math.pi)
             * np.array([1.0 / math.sqrt(2 * l + 1) for l in range(lmax + 1)])
             / math.sqrt(lmax + 1))
    else:  # 'norm'
        n = math.sqrt(4 * math.pi) * np.ones(lmax + 1) / math.sqrt(lmax + 1)

    m = _expand_matrix(lmax)                                # [l, m, i]
    shb = np.einsum("lmb,lmi,l->mbi", shb, m, n)            # [m, b, i]

    return jnp.asarray(sha, jnp.float32), jnp.asarray(shb, jnp.float32)


# --------------------------------------------------------------------------
# Tiling / budget helpers
# --------------------------------------------------------------------------
def _round_up(n, m):
    return ((n + m - 1) // m) * m


def _round_down(n, m):
    return (n // m) * m


def _sublane_align(dtype):
    # f32 -> 8, bf16 -> 16, int8/fp8 -> 32 rows per packed (8,128) tile.
    itemsize = np.dtype(dtype).itemsize
    return max(8, 32 // max(1, itemsize))


def _default_vmem_budget():
    """Per-generation VMEM budget: ~40 MiB on v7x (64 MiB/TC),
    ~80 MiB on v5e/v6e (128 MiB)."""
    cap = 64 << 20  # conservative default = v7x per-TC VMEM
    try:
        info = pltpu.get_tpu_info()
        cap = int(getattr(info, "vmem_capacity_bytes", cap))
    except Exception:
        pass
    return (cap * 5) // 8


# --------------------------------------------------------------------------
# Fused weight precompute (hoisted out of the per-call forward path)
# --------------------------------------------------------------------------
@dataclasses.dataclass(frozen=True)
class FusedWeight:
    w: jax.Array          # [Ip, BAp] fused, padded weight (device)
    I: int
    B: int
    A: int
    Ip: int               # I rounded up to the compute-dtype sublane alignment
    BA: int
    BAp: int              # B*A rounded up to a multiple of tn (itself mult of 128)
    tn: int               # weight / output N-tile (multiple of 128)
    gn: int               # number of N tiles (BAp // tn)
    compute_dtype: np.dtype
    vmem_budget_bytes: int


def prepare_fused_weight(sha, shb, *, weight_dtype=None, vmem_budget_bytes=None):
    """Build W[i, (b,a)] = sum_m shb[m,b,i] * sha[m,a] host-side, pad it to
    MXU-friendly shapes and pick the N-tiling.  Call once, reuse per forward."""
    sha_np = np.asarray(sha, dtype=np.float64)              # [m, a]
    shb_np = np.asarray(shb, dtype=np.float64)              # [m, b, i]
    M, B, I = shb_np.shape
    A = sha_np.shape[1]

    budget = int(vmem_budget_bytes) if vmem_budget_bytes else _default_vmem_budget()
    compute_dtype = np.dtype(weight_dtype) if weight_dtype is not None else np.dtype(np.float32)
    w_bytes = compute_dtype.itemsize

    Ip = _round_up(I, _sublane_align(compute_dtype))
    BA = B * A
    BAp128 = _round_up(BA, 128)

    # N-tile the fused weight so the double-buffered weight tile stays small
    # (keeps large-lmax cases inside v7x's 64 MiB/TC and leaves room for big
    # z-tiles).  For small/medium lmax the whole W stays resident (gn == 1).
    w_tile_limit = min(16 << 20, max(1 << 20, budget // 3))
    tn = min(BAp128, max(128, _round_down(w_tile_limit // max(1, 2 * Ip * w_bytes), 128)))
    BAp = _round_up(BA, tn)
    gn = BAp // tn

    # Fold the m-contraction: W[i, b, a] = sum_m shb[m, b, i] * sha[m, a]
    w = np.einsum("mbi,ma->iba", shb_np, sha_np).reshape(I, BA)
    w_pad = np.zeros((Ip, BAp), dtype=np.float32)
    w_pad[:I, :BA] = w
    w_dev = jnp.asarray(w_pad.astype(compute_dtype))

    return FusedWeight(w=w_dev, I=I, B=B, A=A, Ip=Ip, BA=BA, BAp=BAp,
                       tn=tn, gn=gn, compute_dtype=compute_dtype,
                       vmem_budget_bytes=budget)


# --------------------------------------------------------------------------
# Pallas kernel (forward hot path): one MXU matmul per (n, z) tile.
# --------------------------------------------------------------------------
def _to_s2grid_kernel(x_ref, w_ref, o_ref):
    # x_ref : [TZ, Ip]   z-tile of flattened batch (I zero-padded, aligned)
    # w_ref : [Ip, TN]   fused-weight N-tile (constant over the inner z axis)
    # o_ref : [TZ, TN]   lane-dense output tile (TN multiple of 128)
    o_ref[...] = jnp.dot(
        x_ref[...], w_ref[...], preferred_element_type=jnp.float32
    ).astype(o_ref.dtype)


def to_s2grid_fused(x, fw: FusedWeight, *, out_dtype=None):
    """x: [..., i] -> [..., beta, alpha] using a precomputed fused weight."""
    size = x.shape[:-1]
    I = x.shape[-1]
    assert I == fw.I, (I, fw.I)

    out_dtype = np.dtype(out_dtype) if out_dtype is not None else np.dtype(x.dtype)
    x_bytes = fw.compute_dtype.itemsize
    o_bytes = out_dtype.itemsize
    z_align = max(_sublane_align(fw.compute_dtype), _sublane_align(out_dtype))

    xf = x.reshape(-1, I)
    if xf.dtype != fw.compute_dtype:
        xf = xf.astype(fw.compute_dtype)
    Z = xf.shape[0]

    budget = fw.vmem_budget_bytes

    # --- z-tile selection (kernel is HBM-store bound: size from OUTPUT width)
    # 1. target ~2 MiB output blocks (>=85% of HBM roofline regime).
    tz = max(z_align, _round_down((2 << 20) // max(1, fw.tn * o_bytes), z_align))
    tz = min(tz, 4096)
    # 2. never exceed the (aligned) batch.
    tz = min(tz, _round_up(Z, z_align))
    # 3. fit double-buffered x + out blocks next to the double-buffered W tile.
    #    (If the W tile DMA ever becomes exposed, pl.Buffered(1) on the weight
    #     spec would free half of w_resident; N-tiling already bounds it.)
    w_resident = 2 * fw.Ip * fw.tn * x_bytes
    per_row = 2 * (fw.Ip * x_bytes + fw.tn * o_bytes)
    avail = max(0, budget - w_resident - (2 << 20))
    tz = min(tz, max(z_align, _round_down(avail // per_row, z_align)))
    # 4. v7x: make sure the parallel grid has >= 2 steps so both TensorCores
    #    get work — only when there is enough output to amortize the per-step
    #    overhead (~0.35 us).
    if (fw.gn * pl.cdiv(Z, tz) < 2 and Z >= 2 * z_align
            and Z * fw.BAp * o_bytes >= (1 << 20)):
        tz = max(z_align, _round_up(pl.cdiv(Z, 2), z_align))
    # 5. bound padding waste: fix the step count, then shrink tz to the minimum
    #    aligned size realizing it.
    steps = pl.cdiv(Z, tz)
    tz = max(z_align, _round_up(pl.cdiv(Z, steps), z_align))

    Zp = pl.cdiv(Z, tz) * tz
    gz = Zp // tz

    if Zp != Z or fw.Ip != I:
        xf = jnp.pad(xf, ((0, Zp - Z), (0, fw.Ip - I)))

    # Advisory cost estimate so XLA can overlap the surrounding pad/slice ops.
    flops = 2 * Zp * fw.Ip * fw.BAp
    bytes_accessed = (fw.gn * Zp * fw.Ip * x_bytes     # x re-read once per N tile
                      + fw.Ip * fw.BAp * x_bytes       # each weight tile read once
                      + Zp * fw.BAp * o_bytes)         # output stores (dominant)
    cost = pl.CostEstimate(flops=flops, transcendentals=0,
                           bytes_accessed=bytes_accessed)

    out = pl.pallas_call(
        _to_s2grid_kernel,
        out_shape=jax.ShapeDtypeStruct((Zp, fw.BAp), out_dtype),
        grid_spec=pltpu.PrefetchScalarGridSpec(
            num_scalar_prefetch=0,
            # N is the OUTER axis: each weight tile is DMA'd once and stays
            # resident across the inner z sweep; only the tiny x tile re-reads.
            grid=(fw.gn, gz),
            in_specs=[
                pl.BlockSpec((tz, fw.Ip), lambda n, z: (z, 0)),
                pl.BlockSpec((fw.Ip, fw.tn), lambda n, z: (0, n)),
            ],
            out_specs=pl.BlockSpec((tz, fw.tn), lambda n, z: (z, n)),
        ),
        compiler_params=pltpu.CompilerParams(
            dimension_semantics=("parallel", "parallel"),  # shards across TCs on v7x
            vmem_limit_bytes=int(min(budget + (8 << 20), 120 << 20)),
        ),
        cost_estimate=cost,
    )(xf, fw.w)

    out = out[:Z, :fw.BA].reshape(*size, fw.B, fw.A)
    return out


def to_s2grid(x, sha, shb, *, weight_dtype=None, out_dtype=None,
              vmem_budget_bytes=None):
    """Convenience wrapper matching the original (x, sha, shb) API.

    NOTE: this re-fuses/pads the weight on every call; for production use
    `prepare_fused_weight(...)` once and call `to_s2grid_fused(x, fw)`.
    """
    fw = prepare_fused_weight(sha, shb, weight_dtype=weight_dtype,
                              vmem_budget_bytes=vmem_budget_bytes)
    return to_s2grid_fused(x, fw, out_dtype=out_dtype)


# --------------------------------------------------------------------------
# Pure-JAX reference (mirrors the PyTorch einsums exactly)
# --------------------------------------------------------------------------
def to_s2grid_ref(x, sha, shb):
    size = x.shape[:-1]
    I = x.shape[-1]
    xf = x.reshape(-1, I)
    tmp = jnp.einsum("mbi,zi->zmb", shb, xf)
    out = jnp.einsum("ma,zmb->zba", sha, tmp)
    return out.reshape(*size, *out.shape[1:])


if __name__ == "__main__":
    lmax = 3
    normalization = "component"
    sha, shb = make_to_s2grid_buffers(lmax, res=None, normalization=normalization)
    # sha: [2*lmax+1, res_alpha] = [7, 16]; shb: [2*lmax+1, res_beta, (lmax+1)^2] = [7, 8, 16]

    key = jax.random.PRNGKey(0)
    x = jax.random.normal(key, (2, 4, (lmax + 1) ** 2), dtype=jnp.float32)  # [..., i]

    # Hot path: weight fused/padded once, forward is a single pallas_call.
    fw = prepare_fused_weight(sha, shb)
    out = to_s2grid_fused(x, fw)
    out = jax.block_until_ready(out)

    ref = to_s2grid_ref(x, sha, shb)
    assert out.shape == (2, 4, 8, 16), out.shape
    assert out.dtype == jnp.float32
    assert jnp.allclose(out, ref, atol=1e-5, rtol=1e-5), float(jnp.max(jnp.abs(out - ref)))

    # Convenience API (same semantics, weight fused on the fly).
    out2 = jax.block_until_ready(to_s2grid(x, sha, shb))
    assert jnp.allclose(out2, ref, atol=1e-5, rtol=1e-5)

    print("KERNEL_OK")
</pallas_src>

<mosaic_0001>
module attributes {stable_mosaic.version = 11 : i64} {
  func.func @_to_s2grid_kernel(%arg0: i32, %arg1: i32, %arg2: memref<8x16xf32, #tpu.memory_space<vmem>>, %arg3: memref<16x128xf32, #tpu.memory_space<vmem>>, %arg4: memref<8x128xf32, #tpu.memory_space<vmem>>) attributes {dimension_semantics = [#tpu.dimension_semantics<parallel>, #tpu.dimension_semantics<parallel>], iteration_bounds = array<i64: 1, 1>, scalar_prefetch = 0 : i64, scratch_operands = 0 : i64, tpu.core_type = #tpu.core_type<tc>, window_params = [{transform_indices = @transform_0, window_bounds = array<i64: 8, 16>}, {transform_indices = @transform_1, window_bounds = array<i64: 16, 128>}, {transform_indices = @transform_2, window_bounds = array<i64: 8, 128>}]} {
    %c0 = arith.constant 0 : index
    %c0_0 = arith.constant 0 : index
    %0 = vector.load %arg2[%c0, %c0_0] : memref<8x16xf32, #tpu.memory_space<vmem>>, vector<8x16xf32>
    %c0_1 = arith.constant 0 : index
    %c0_2 = arith.constant 0 : index
    %1 = vector.load %arg3[%c0_1, %c0_2] : memref<16x128xf32, #tpu.memory_space<vmem>>, vector<16x128xf32>
    %cst = arith.constant dense<0.000000e+00> : vector<8x128xf32>
    %2 = tpu.matmul %0, %1, %cst {dimension_numbers = #tpu.dot_dimension_numbers<[1], [0], [0], [1], [0, 0, 1, 1], [], []>} : vector<8x16xf32>, vector<16x128xf32>, vector<8x128xf32> -> vector<8x128xf32>
    %c0_3 = arith.constant 0 : index
    %c0_4 = arith.constant 0 : index
    %3 = vector.load %arg4[%c0_3, %c0_4] : memref<8x128xf32, #tpu.memory_space<vmem>>, vector<8x128xf32>
    tpu.vector_store %arg4[%c0_3, %c0_4], %2 {strides = array<i32>} : memref<8x128xf32, #tpu.memory_space<vmem>>, vector<8x128xf32>,
    return
  }
  func.func @transform_0(%arg0: i32, %arg1: i32) -> (i32, i32) {
    %c0_i32 = arith.constant 0 : i32
    %c0_i32_0 = arith.constant 0 : i32
    return %arg1, %c0_i32 : i32, i32
  }
  func.func @transform_1(%arg0: i32, %arg1: i32) -> (i32, i32) {
    %c0_i32 = arith.constant 0 : i32
    %c0_i32_0 = arith.constant 0 : i32
    return %c0_i32, %arg0 : i32, i32
  }
  func.func @transform_2(%arg0: i32, %arg1: i32) -> (i32, i32) {
    %c0_i32 = arith.constant 0 : i32
    return %arg1, %arg0 : i32, i32
  }
}

</mosaic_0001>

<llo_original>
// kernel: tpu_custom_call.1
$region0: #{tpu_custom_call.1}
  #allocation0 [shape = 'u32[]', space=smem, size = 0x4, offset = 0x4, fixed_abs, tag = 'smem constant byte address 0x4 - core index']
  #allocation1 [shape = 'u32[72,128]{1,0:T(1,128)}', space=vmem, size = 0x9000, scoped, tag = 'internal scratch']
  %s0 = inlined_call_operand.hbm [shape: f32[8,16], index: 0, kind: input, shape index: {}]
  %s1 = inlined_call_operand.hbm [shape: f32[16,128], index: 1, kind: input, shape index: {}]
  %s2 = inlined_call_operand.hbm [shape: f32[8,128], index: 2, kind: output, shape index: {}]
  %s3 = sld [smem:[#allocation0]]
  $region26: #{tpu_custom_call.1} parent=0
    _
  %s5 = ssub.s32 1, %s3
  %s6 = scalar_select 0, %s5, %s3
  $region1: #{tpu_custom_call.1} parent=0
    #allocation2 [shape = 'u8[4096]{0}', space=vmem, size = 0x1000, scoped, tag = 'input window, operand 0, single buffered']
    #allocation3 [shape = 's32[1]{0}', space=sflag, size = 0x4, scoped, tag = 'scoped memory for tpu_custom_call.1']
    #allocation4 [shape = 's32[1]{0}', space=sflag, size = 0x4, scoped, tag = 'scoped memory for tpu_custom_call.1']
    #allocation5 [shape = 'u8[8192]{0}', space=vmem, size = 0x2000, scoped, tag = 'input window, operand 1, single buffered']
    #allocation6 [shape = 's32[1]{0}', space=sflag, size = 0x4, scoped, tag = 'scoped memory for tpu_custom_call.1']
    #allocation7 [shape = 'u8[4096]{0}', space=vmem, size = 0x1000, scoped, tag = 'output window, operand 0, single buffered']
    %7 = vsyncpa [#allocation3], 0
    %8 = vsyncpa [#allocation6], 0
    %9 = vsyncpa [#allocation4], 0
    // Predicated region
    $region2: #{tpu_custom_call.1} parent=1 // pred_check
      _
    $region3: #{tpu_custom_call.1} parent=1 // pred_check_branch
      %11 = sbr.rel (0) target = $region5
    $region4: #{tpu_custom_call.1} parent=1 // pred_region
      %13 = vsyncadd [#allocation3], 0
      %s15 = sshll.u32 %s0, 4
      %s16 = int_to_ptr.hbm [resolvable:$true] %s15
      %s17 = sshll.u32 [#allocation2], 4
      %s18 = int_to_ptr.vmem [resolvable:$true] %s17
      %20 = dma.hbm_to_vmem [thread:$0]  %s16, 128, %s18, [#allocation3]
    $region5: #{tpu_custom_call.1} parent=1 // pred_fallthru
      _
    // Predicated region
    $region6: #{tpu_custom_call.1} parent=1 // pred_check
      _
    $region7: #{tpu_custom_call.1} parent=1 // pred_check_branch
      %22 = sbr.rel (0) target = $region9
    $region8: #{tpu_custom_call.1} parent=1 // pred_region
      %24 = vsyncadd [#allocation6], 0
      %s25 = sshll.u32 %s1, 4
      %s26 = int_to_ptr.hbm [resolvable:$true] %s25
      %s27 = sshll.u32 [#allocation5], 4
      %s28 = int_to_ptr.vmem [resolvable:$true] %s27
      %33 = dma.hbm_to_vmem [thread:$0]  %s26, 256, %s28, [#allocation6], 128, 128, 8
    $region9: #{tpu_custom_call.1} parent=1 // pred_fallthru
      _
    // Predicated region
    $region10: #{tpu_custom_call.1} parent=1 // pred_check
      _
    $region11: #{tpu_custom_call.1} parent=1 // pred_check_branch
      %35 = sbr.rel (0) target = $region13
    $region12: #{tpu_custom_call.1} parent=1 // pred_region
      %37 = dma.done [#allocation3], 128
    $region13: #{tpu_custom_call.1} parent=1 // pred_fallthru
      _
    // Predicated region
    $region14: #{tpu_custom_call.1} parent=1 // pred_check
      _
    $region15: #{tpu_custom_call.1} parent=1 // pred_check_branch
      %39 = sbr.rel (0) target = $region17
    $region16: #{tpu_custom_call.1} parent=1 // pred_region
      %41 = dma.done [#allocation6], 256
    $region17: #{tpu_custom_call.1} parent=1 // pred_fallthru
      _
    %v42 = vld [vmem:[#allocation2] sm:$0xff]
    %v43 = vld [vmem:[#allocation5] sm:$0xff]
    %v44 = vld [vmem:[#allocation5 + $0x8] sm:$0xff]
    %vm45 = vcmask 130048
    %v47 = vsel %vm45, %v42, 0
    %49 = vmatpush.msra.mxu0 0.0
    %50 = vmatpush.msra.mxu0 0.0
    %51 = vmatpush.msra.mxu0 0.0
    %52 = vmatpush.msra.mxu0 0.0
    %53 = vmatpush.msra.mxu0 0.0
    %54 = vmatpush.msra.mxu0 0.0
    %55 = vmatpush.msra.mxu0 0.0
    %56 = vmatpush.msra.mxu0 0.0
    %57 = vmatpush.msra.mxu0 0.0
    %58 = vmatpush.msra.mxu0 0.0
    %59 = vmatpush.msra.mxu0 0.0
    %60 = vmatpush.msra.mxu0 0.0
    %61 = vmatpush.msra.mxu0 0.0
    %62 = vmatpush.msra.mxu0 0.0
    %63 = vmatpush.msra.mxu0 %v44
    %64 = vmatpush.msra.mxu0 %v43
    %65 = vmatmul.f32.gmra.mxu0 %v47
    %v66 = vpop.f32.mrf.mxu0
    %v67 = vadd.f32 0.0, %v66
    %68 = vdwg.mxu0
    %69 = vst [vmem:[#allocation7] sm:$0xff] %v67
    // Predicated region
    $region18: #{tpu_custom_call.1} parent=1 // pred_check
      _
    $region19: #{tpu_custom_call.1} parent=1 // pred_check_branch
      %71 = sbr.rel (0) target = $region21
    $region20: #{tpu_custom_call.1} parent=1 // pred_region
      %73 = vsyncadd [#allocation4], 0
      %s75 = sshll.u32 [#allocation7], 4
      %s76 = int_to_ptr.vmem [resolvable:$true] %s75
      %s77 = sshll.u32 %s2, 4
      %s78 = int_to_ptr.hbm [resolvable:$true] %s77
      %80 = dma.vmem_to_hbm [thread:$0]  %s76, 128, %s78, [#allocation4]
    $region21: #{tpu_custom_call.1} parent=1 // pred_fallthru
      _
    // Predicated region
    $region22: #{tpu_custom_call.1} parent=1 // pred_check
      _
    $region23: #{tpu_custom_call.1} parent=1 // pred_check_branch
      %82 = sbr.rel (0) target = $region25
    $region24: #{tpu_custom_call.1} parent=1 // pred_region
      %84 = dma.done [#allocation4], 128
    $region25: #{tpu_custom_call.1} parent=1 // pred_fallthru
      _
    %85 = vsyncpa [#allocation3], 1
    %86 = vsyncpa [#allocation6], 1
    %87 = vsyncpa [#allocation4], 1

</llo_original>
